<compile_context>
chip_gen: v5e
topology: v5e:2x2
jax: 0.10.0
libtpu: 0.0.40
codegen_flags: <defaults>
</compile_context>

<pallas_src>
import functools

import jax
import jax.numpy as jnp
from jax.experimental import pallas as pl
from jax.experimental.pallas import tpu as pltpu


def _round_up(x, m):
    return ((x + m - 1) // m) * m


def _sublane_multiple(itemsize):
    """Packed-sublane granularity: f32 -> 8, bf16 -> 16, int8/fp8 -> 32."""
    return 8 * max(1, 4 // int(itemsize))


def _vmem_capacity_bytes():
    try:
        return int(pltpu.get_tpu_info().vmem_capacity_bytes)
    except Exception:
        return 64 * (1 << 20)  # conservative fallback (v7x per-TensorCore VMEM)


def _choose_tile_rows(n, itemsize, compute_itemsize, vmem_capacity):
    """Rows per tile, sized from the chip's VMEM and the true per-row footprint.

    Footprint model per tile row:
      2 double-buffered native-dtype input rows        (2 * n * itemsize)
    + ~4 compute-dtype elementwise/iota intermediates  (4 * n * compute_itemsize)
    Budget ~= capacity / 5.  Prefer >= 2 tiles so both v7x TensorCores get work
    and BlockSpec double-buffering actually overlaps DMA with compute.
    """
    sub = _sublane_multiple(itemsize)
    budget = max(1 << 20, vmem_capacity // 5)
    per_row_bytes = 2 * n * itemsize + 4 * n * compute_itemsize
    max_rows = max(sub, budget // max(1, per_row_bytes))

    two_tile_cap = _round_up(pl.cdiv(n, 2), sub)
    if two_tile_cap < n:                    # splitting into >= 2 legal tiles is possible
        max_rows = min(max_rows, two_tile_cap)

    if n <= max_rows:
        return n                            # tiny N: single full-extent tile
    return max(sub, (max_rows // sub) * sub)


def _triplet_loss_kernel(diag_ref, scores_ref, out_ref, *, margin, max_violation,
                         tile_rows, n, compute_dtype):
    i = pl.program_id(0)

    # DMA happens in native dtype; any cast happens after the load, in VMEM.
    s = scores_ref[...].astype(compute_dtype)       # (TM, N)
    d = diag_ref[...].astype(compute_dtype)         # (TM, 1) precomputed diagonal

    # cost = clamp(margin + scores - diag, min=0)   (stays in compute_dtype)
    cost = jnp.maximum(margin + s - d, 0.0)

    # Global row ids for this tile; rows >= n are padding of a partial last tile.
    row_ids = jax.lax.broadcasted_iota(jnp.int32, (tile_rows, 1), 0) + i * tile_rows
    row_valid = row_ids < n                         # (TM, 1) bool

    if max_violation:
        # Diagonal (and padded rows) must be zeroed *before* the per-row max.
        col_ids = jax.lax.broadcasted_iota(jnp.int32, cost.shape, 1)
        keep = (col_ids != row_ids) & row_valid
        cost = jnp.where(keep, cost, 0.0)
        per_row = jnp.max(cost, axis=1, keepdims=True).astype(jnp.float32)
    else:
        # Sum path: no TMxN iota/mask.  Each valid row's diagonal element equals
        # max(margin, 0); subtract it from the unmasked f32 row sum instead.
        per_row = jnp.sum(cost, axis=1, keepdims=True, dtype=jnp.float32)
        per_row = per_row - max(float(margin), 0.0)

    per_row = jnp.where(row_valid, per_row, 0.0)    # zero padded rows of the last tile
    partial = jnp.sum(per_row)

    # Lane/sublane-dense partial-sum slab (wrapper reads [tile, 0, 0]); a full
    # (8, 128) vreg gives an unmasked vst instead of masked partial stores.
    out_ref[...] = jnp.full(out_ref.shape, partial, dtype=jnp.float32)


def triplet_loss(scores, margin=0.0, max_violation=False, reduction="sum",
                 tile_rows=None):
    """Pallas TPU implementation of TripletLoss.forward(scores)."""
    assert scores.ndim == 2 and scores.shape[0] == scores.shape[1], \
        "scores must be square (N, N)"
    if reduction not in ("sum", "mean"):
        raise NotImplementedError(reduction)

    n = scores.shape[0]
    itemsize = jnp.dtype(scores.dtype).itemsize

    # bf16 elementwise runs natively on the v6e/v7x VPU; everything else in f32.
    # TODO(synk): force f32 compute on v5e (no bf16 VALU) once a chip-version query is plumbed.
    compute_dtype = jnp.bfloat16 if scores.dtype == jnp.bfloat16 else jnp.float32
    compute_itemsize = jnp.dtype(compute_dtype).itemsize

    vmem_capacity = _vmem_capacity_bytes()
    sub = _sublane_multiple(itemsize)
    tm = tile_rows if tile_rows is not None else _choose_tile_rows(
        n, itemsize, compute_itemsize, vmem_capacity)
    assert tm == n or tm % sub == 0, \
        f"tile_rows must equal N or be a multiple of {sub} for dtype {scores.dtype}"
    num_tiles = pl.cdiv(n, tm)

    # Diagonal extraction is O(N) and trivial in XLA; feed it as a tiny side input.
    diag = jnp.diagonal(scores).reshape(n, 1)

    kernel = functools.partial(
        _triplet_loss_kernel,
        margin=float(margin),
        max_violation=bool(max_violation),
        tile_rows=tm,
        n=n,
        compute_dtype=compute_dtype,
    )

    # Explicit VMEM budget: true double-buffered footprint (inputs + intermediates)
    # with headroom, clamped below the physically available VMEM on this chip.
    footprint = tm * (2 * n * itemsize + 4 * n * compute_itemsize) + (1 << 20)
    vmem_limit = int(min(vmem_capacity * 3 // 4,
                         max(32 * (1 << 20), 2 * footprint)))

    partials = pl.pallas_call(
        kernel,
        out_shape=jax.ShapeDtypeStruct((num_tiles, 8, 128), jnp.float32),
        grid=(num_tiles,),
        in_specs=[
            pl.BlockSpec((tm, 1), lambda i: (i, 0)),   # diagonal column
            pl.BlockSpec((tm, n), lambda i: (i, 0)),   # row slab, full N in lanes
        ],
        out_specs=pl.BlockSpec((1, 8, 128), lambda i: (i, 0, 0)),
        compiler_params=pltpu.CompilerParams(
            dimension_semantics=("parallel",),
            vmem_limit_bytes=vmem_limit,
        ),
    )(diag, scores)

    total = jnp.sum(partials[:, 0, 0])
    if reduction == "sum":
        return total
    # 'mean': N*N elements normally, N elements after the per-row max.
    denom = n if max_violation else n * n
    return total / jnp.float32(denom)


def _reference(scores, margin=0.0, max_violation=False, reduction="sum"):
    """Pure-JAX reference mirroring the PyTorch module (f32)."""
    n = scores.shape[0]
    scores = scores.astype(jnp.float32)
    d = jnp.diag(scores)[:, None]
    cost = jnp.maximum(margin + scores - d, 0.0)
    eye = jnp.eye(n, dtype=bool)
    cost = jnp.where(eye, 0.0, cost)
    if max_violation:
        cost = jnp.max(cost, axis=1)
    if reduction == "sum":
        return jnp.sum(cost)
    elif reduction == "mean":
        return jnp.mean(cost)
    raise NotImplementedError


if __name__ == "__main__":
    key = jax.random.PRNGKey(0)
    k0, k1, k2, k3 = jax.random.split(key, 4)

    # 1) Small f32 similarity matrix, default config (margin=0, sum).
    N = 8
    scores = jax.random.normal(k0, (N, N), dtype=jnp.float32)
    loss = jax.block_until_ready(triplet_loss(scores))
    ref = _reference(scores)
    assert jnp.allclose(loss, ref, atol=1e-5, rtol=1e-5), (loss, ref)

    # 2) max_violation + mean path.
    loss2 = jax.block_until_ready(
        triplet_loss(scores, margin=0.2, max_violation=True, reduction="mean"))
    ref2 = _reference(scores, margin=0.2, max_violation=True, reduction="mean")
    assert jnp.allclose(loss2, ref2, atol=1e-5, rtol=1e-5), (loss2, ref2)

    # 3) Explicit multi-tile + partial-last-tile (row masking / diag-subtract) path.
    N2 = 20
    scores2 = jax.random.normal(k1, (N2, N2), dtype=jnp.float32)
    loss3 = jax.block_until_ready(
        triplet_loss(scores2, margin=0.1, reduction="sum", tile_rows=8))
    ref3 = _reference(scores2, margin=0.1, reduction="sum")
    assert jnp.allclose(loss3, ref3, atol=1e-4, rtol=1e-5), (loss3, ref3)

    loss4 = jax.block_until_ready(
        triplet_loss(scores2, margin=0.1, max_violation=True, reduction="mean",
                     tile_rows=8))
    ref4 = _reference(scores2, margin=0.1, max_violation=True, reduction="mean")
    assert jnp.allclose(loss4, ref4, atol=1e-5, rtol=1e-5), (loss4, ref4)

    # 4) Auto tiling: >= 2 tiles (v7x dual-TC path) with a padded last tile.
    N3 = 300
    scores3 = jax.random.normal(k2, (N3, N3), dtype=jnp.float32)
    loss5 = jax.block_until_ready(triplet_loss(scores3, margin=0.05, reduction="sum"))
    ref5 = _reference(scores3, margin=0.05, reduction="sum")
    assert jnp.allclose(loss5, ref5, atol=5e-2, rtol=1e-4), (loss5, ref5)

    loss6 = jax.block_until_ready(
        triplet_loss(scores3, margin=0.05, max_violation=True, reduction="mean"))
    ref6 = _reference(scores3, margin=0.05, max_violation=True, reduction="mean")
    assert jnp.allclose(loss6, ref6, atol=1e-4, rtol=1e-4), (loss6, ref6)

    # 5) bf16 input: bf16 elementwise compute, f32 accumulation (loose tolerance
    #    vs. the f32 reference because the elementwise math is bf16-rounded).
    N4 = 16
    scores4 = jax.random.normal(k3, (N4, N4), dtype=jnp.float32).astype(jnp.bfloat16)
    loss7 = jax.block_until_ready(triplet_loss(scores4, margin=0.1, reduction="sum"))
    ref7 = _reference(scores4.astype(jnp.float32), margin=0.1, reduction="sum")
    assert jnp.allclose(loss7, ref7, atol=1.0, rtol=3e-2), (loss7, ref7)

    print("KERNEL_OK")
</pallas_src>

<mosaic_0001>
module attributes {stable_mosaic.version = 11 : i64} {
  func.func @_triplet_loss_kernel(%arg0: i32, %arg1: memref<8x1xf32, #tpu.memory_space<vmem>>, %arg2: memref<8x8xf32, #tpu.memory_space<vmem>>, %arg3: memref<1x8x128xf32, #tpu.memory_space<vmem>>) attributes {dimension_semantics = [#tpu.dimension_semantics<parallel>], iteration_bounds = array<i64: 1>, scalar_prefetch = 0 : i64, scratch_operands = 0 : i64, tpu.core_type = #tpu.core_type<tc>, window_params = [{transform_indices = @transform_0, window_bounds = array<i64: 8, 1>}, {transform_indices = @transform_1, window_bounds = array<i64: 8, 8>}, {transform_indices = @transform_2, window_bounds = array<i64: 1, 8, 128>}]} {
    %c0 = arith.constant 0 : index
    %c0_0 = arith.constant 0 : index
    %0 = vector.load %arg2[%c0, %c0_0] : memref<8x8xf32, #tpu.memory_space<vmem>>, vector<8x8xf32>
    %c0_1 = arith.constant 0 : index
    %c0_2 = arith.constant 0 : index
    %1 = vector.load %arg1[%c0_1, %c0_2] : memref<8x1xf32, #tpu.memory_space<vmem>>, vector<8x1xf32>
    %cst = arith.constant 0.000000e+00 : f32
    %2 = vector.broadcast %cst : f32 to vector<8x8xf32>
    %3 = arith.addf %2, %0 : vector<8x8xf32>
    %4 = vector.broadcast %1 : vector<8x1xf32> to vector<8x8xf32>
    %5 = arith.subf %3, %4 : vector<8x8xf32>
    %cst_3 = arith.constant 0.000000e+00 : f32
    %6 = vector.broadcast %cst_3 : f32 to vector<8x8xf32>
    %7 = arith.maximumf %5, %6 : vector<8x8xf32>
    %8 = tpu.iota {dimensions = array<i32: 0>} : vector<8x1xi32>
    %c8_i32 = arith.constant 8 : i32
    %9 = arith.muli %arg0, %c8_i32 : i32
    %10 = vector.broadcast %9 : i32 to vector<8x1xi32>
    %11 = arith.addi %8, %10 : vector<8x1xi32>
    %c8_i32_4 = arith.constant 8 : i32
    %12 = vector.broadcast %c8_i32_4 : i32 to vector<8x1xi32>
    %13 = arith.cmpi slt, %11, %12 : vector<8x1xi32>
    %cst_5 = arith.constant dense<0.000000e+00> : vector<8xf32>
    %14 = vector.multi_reduction <add>, %7, %cst_5 [1] : vector<8x8xf32> to vector<8xf32>
    %15 = vector.shape_cast %14 : vector<8xf32> to vector<8x1xf32>
    %cst_6 = arith.constant 0.000000e+00 : f32
    %16 = vector.broadcast %cst_6 : f32 to vector<8x1xf32>
    %17 = arith.subf %15, %16 : vector<8x1xf32>
    %cst_7 = arith.constant 0.000000e+00 : f32
    %18 = vector.broadcast %cst_7 : f32 to vector<8x1xf32>
    %19 = arith.select %13, %17, %18 : vector<8x1xi1>, vector<8x1xf32>
    %20 = vector.shape_cast %19 : vector<8x1xf32> to vector<1x8x1xf32>
    %cst_8 = arith.constant dense<0.000000e+00> : vector<1xf32>
    %21 = vector.multi_reduction <add>, %20, %cst_8 [1, 2] : vector<1x8x1xf32> to vector<1xf32>
    %22 = vector.shape_cast %21 : vector<1xf32> to vector<1x1x1xf32>
    %23 = vector.extract %22[0, 0, 0] : f32 from vector<1x1x1xf32>
    %24 = vector.broadcast %23 : f32 to vector<1x8x128xf32>
    %c0_9 = arith.constant 0 : index
    %c0_10 = arith.constant 0 : index
    %c0_11 = arith.constant 0 : index
    %25 = vector.load %arg3[%c0_9, %c0_10, %c0_11] : memref<1x8x128xf32, #tpu.memory_space<vmem>>, vector<1x8x128xf32>
    tpu.vector_store %arg3[%c0_9, %c0_10, %c0_11], %24 {strides = array<i32>} : memref<1x8x128xf32, #tpu.memory_space<vmem>>, vector<1x8x128xf32>,
    return
  }
  func.func @transform_0(%arg0: i32) -> (i32, i32) {
    %c0_i32 = arith.constant 0 : i32
    %c0_i32_0 = arith.constant 0 : i32
    return %arg0, %c0_i32 : i32, i32
  }
  func.func @transform_1(%arg0: i32) -> (i32, i32) {
    %c0_i32 = arith.constant 0 : i32
    %c0_i32_0 = arith.constant 0 : i32
    return %arg0, %c0_i32 : i32, i32
  }
  func.func @transform_2(%arg0: i32) -> (i32, i32, i32) {
    %c0_i32 = arith.constant 0 : i32
    %c0_i32_0 = arith.constant 0 : i32
    %c0_i32_1 = arith.constant 0 : i32
    return %arg0, %c0_i32, %c0_i32_0 : i32, i32, i32
  }
}

</mosaic_0001>

<llo_original>
// kernel: tpu_custom_call.1
$region0: #{tpu_custom_call.1}
  #allocation0 [shape = 'u32[]', space=smem, size = 0x4, offset = 0x4, fixed_abs, tag = 'smem constant byte address 0x4 - core index']
  #allocation1 [shape = 'u32[72,128]{1,0:T(1,128)}', space=vmem, size = 0x9000, scoped, tag = 'internal scratch']
  %s0 = inlined_call_operand.vmem [shape: f32[8,1], index: 0, kind: input, shape index: {}]
  %s1 = inlined_call_operand.vmem [shape: f32[8,8], index: 1, kind: input, shape index: {}]
  %s2 = inlined_call_operand.hbm [shape: f32[1,8,128], index: 2, kind: output, shape index: {}]
  %s3 = sld [smem:[#allocation0]]
  $region18: #{tpu_custom_call.1} parent=0
    _
  %s5 = ssub.s32 1, %s3
  %s6 = scalar_select 0, %s5, %s3
  $region1: #{tpu_custom_call.1} parent=0
    #allocation2 [shape = 'u8[4096]{0}', space=vmem, size = 0x1000, scoped, tag = 'output window, operand 0, single buffered']
    #allocation3 [shape = 's32[1]{0}', space=sflag, size = 0x4, scoped, tag = 'scoped memory for tpu_custom_call.1']
    %7 = vsyncpa [#allocation3], 0
    // Predicated region
    $region2: #{tpu_custom_call.1} parent=1 // pred_check
      _
    $region3: #{tpu_custom_call.1} parent=1 // pred_check_branch
      %9 = sbr.rel (0) target = $region5
    $region4: #{tpu_custom_call.1} parent=1 // pred_region
      _
    $region5: #{tpu_custom_call.1} parent=1 // pred_fallthru
      _
    // Predicated region
    $region6: #{tpu_custom_call.1} parent=1 // pred_check
      _
    $region7: #{tpu_custom_call.1} parent=1 // pred_check_branch
      %11 = sbr.rel (0) target = $region9
    $region8: #{tpu_custom_call.1} parent=1 // pred_region
      _
    $region9: #{tpu_custom_call.1} parent=1 // pred_fallthru
      _
    %v12 = vld [vmem:[%s1] sm:$0xff]
    %v13 = vld [vmem:[%s0] sm:$0xff]
    %v14 = vadd.f32 %v12, 0.0
    %16 = vset.pattern.permute.xlu0 0
    %17 = vperm.xlu0 %16, %v13
    %v18 = vpop.permute.xlu0 %17
    %v20 = vsub.f32 %v14, %v18
    %v21 = vmax.f32 %v20, 0.0
    %v22 = vlaneseq
    %v23 = vshrl.u32 %v22, 7
    %s24 = smul.u32 0, 8
    %v25 = vstv %s24
    %v26 = vadd.s32 %v23, %v25
    %vm27 = vcmp.lt.s32.totalorder %v26, 8
    %vm28 = vcmask 64512
    %v29 = vsel %vm28, %v21, 0.0
    %30 = vadd.xlane.f32.xlu0 %v29
    %v31 = vpop.xlane.xlu0 %30
    %v32 = vsel %vm27, %v31, 0.0
    %vm33 = vcmask 7168
    %v34 = vsel %vm33, %v32, 0.0
    %35 = vadd.xlane.f32.xlu0 %v34
    %v36 = vpop.xlane.xlu0 %35
    %v37 = vrot.slane %v36, 4
    %v38 = vadd.f32 %v36, %v37
    %v39 = vrot.slane %v38, 2
    %v40 = vadd.f32 %v38, %v39
    %v41 = vrot.slane %v40, 1
    %v42 = vadd.f32 %v40, %v41
    %s43 = vtos %v42
    %v44 = vstv %s43
    %45 = vst [vmem:[#allocation2] sm:$0xff] %v44
    // Predicated region
    $region10: #{tpu_custom_call.1} parent=1 // pred_check
      _
    $region11: #{tpu_custom_call.1} parent=1 // pred_check_branch
      %47 = sbr.rel (0) target = $region13
    $region12: #{tpu_custom_call.1} parent=1 // pred_region
      %49 = vsyncadd [#allocation3], 0
      %s51 = sshll.u32 [#allocation2], 4
      %s52 = int_to_ptr.vmem [resolvable:$true] %s51
      %s53 = sshll.u32 %s2, 4
      %s54 = int_to_ptr.hbm [resolvable:$true] %s53
      %56 = dma.vmem_to_hbm [thread:$0]  %s52, 128, %s54, [#allocation3]
    $region13: #{tpu_custom_call.1} parent=1 // pred_fallthru
      _
    // Predicated region
    $region14: #{tpu_custom_call.1} parent=1 // pred_check
      _
    $region15: #{tpu_custom_call.1} parent=1 // pred_check_branch
      %58 = sbr.rel (0) target = $region17
    $region16: #{tpu_custom_call.1} parent=1 // pred_region
      %60 = dma.done [#allocation3], 128
    $region17: #{tpu_custom_call.1} parent=1 // pred_fallthru
      _
    %61 = vsyncpa [#allocation3], 1

</llo_original>
